<compile_context>
chip_gen: v5e
topology: v5e:2x2
jax: 0.10.0
libtpu: 0.0.40
codegen_flags: <defaults>
</compile_context>

<pallas_src>
import functools
import math

import jax
import jax.numpy as jnp
from jax import lax
from jax.experimental import pallas as pl
from jax.experimental.pallas import tpu as pltpu


# ---------------------------------------------------------------------------
# Kernel 1: fused Q/K/V projection (the three nn.Linear layers in one matmul)
#   x_tile:(TM, D_in) @ W_qkv:(D_in, 3*D_out) + b_qkv:(1, 3*D_out)
# Weight/bias blocks are index-mapped to (0, 0) every step -> VMEM-resident.
# ---------------------------------------------------------------------------
def qkv_proj_kernel(x_ref, w_ref, b_ref, q_ref, k_ref, v_ref, *, d_out):
    x = x_ref[...].astype(w_ref.dtype)            # bf16 MXU operand
    y = jnp.dot(x, w_ref[...], preferred_element_type=jnp.float32) + b_ref[...]
    q_ref[...] = y[:, :d_out].astype(q_ref.dtype)
    k_ref[...] = y[:, d_out:2 * d_out].astype(k_ref.dtype)
    v_ref[...] = y[:, 2 * d_out:].astype(v_ref.dtype)


# ---------------------------------------------------------------------------
# Kernel 2: attention for one batch element (all heads per grid step).
# Head split / merge = static column slices of the (S, D_out) VMEM tiles.
# ---------------------------------------------------------------------------
def attention_kernel(q_ref, k_ref, v_ref, o_ref, *, num_heads, head_dim, scale):
    # TODO(synk): for long sequences add flash-style KV tiling with an online
    # softmax (running max/sum scratch) — mandatory for S >= 2k on v7x. At the
    # shapes used here the full (S, S) f32 scores tile fits VMEM comfortably.
    for h in range(num_heads):                     # static unroll over heads
        cols = slice(h * head_dim, (h + 1) * head_dim)
        q = q_ref[:, cols] * scale                 # fold 1/sqrt(hd) into (S, hd)
        k = k_ref[:, cols]
        v = v_ref[:, cols]
        # Contract head_dim of both operands directly -> no explicit k.T.
        scores = lax.dot_general(q, k, (((1,), (1,)), ((), ())),
                                 preferred_element_type=jnp.float32)
        m = jnp.max(scores, axis=-1, keepdims=True)
        e = jnp.exp(scores - m)
        inv_l = pl.reciprocal(jnp.sum(e, axis=-1, keepdims=True), approx=True)
        probs = (e * inv_l).astype(v.dtype)        # bf16 MXU operand
        ctx = jnp.dot(probs, v, preferred_element_type=jnp.float32)
        o_ref[:, cols] = ctx.astype(o_ref.dtype)


# ---------------------------------------------------------------------------
# Python wrapper
# ---------------------------------------------------------------------------
def self_attention_forward(x, params, num_heads, *,
                           compute_dtype=jnp.bfloat16, row_tile=256):
    """x: (B, S, D_in) float32. Returns context (B, S, D_out)."""
    B, S, D_in = x.shape
    wq, bq, wk, bk, wv, bv = params
    D_out = wq.shape[1]
    head_dim = D_out // num_heads
    N = B * S
    scale = 1.0 / math.sqrt(head_dim)

    # One wide weight for a single fused projection matmul (cast once, host-side).
    w_qkv = jnp.concatenate([wq, wk, wv], axis=1).astype(compute_dtype)
    b_qkv = jnp.concatenate([bq, bk, bv], axis=1).astype(jnp.float32)

    x_flat = x.reshape(N, D_in)

    tm = min(row_tile, N)                          # row tile for the projection
    grid_rows = pl.cdiv(N, tm)

    # --- fused, row-tiled, pipelined Q/K/V projection -----------------------
    q_flat, k_flat, v_flat = pl.pallas_call(
        functools.partial(qkv_proj_kernel, d_out=D_out),
        out_shape=[jax.ShapeDtypeStruct((N, D_out), compute_dtype)] * 3,
        grid=(grid_rows,),
        in_specs=[pl.BlockSpec((tm, D_in), lambda i: (i, 0)),
                  pl.BlockSpec((D_in, 3 * D_out), lambda i: (0, 0)),
                  pl.BlockSpec((1, 3 * D_out), lambda i: (0, 0))],
        out_specs=[pl.BlockSpec((tm, D_out), lambda i: (i, 0))] * 3,
        compiler_params=pltpu.CompilerParams(
            dimension_semantics=("parallel",)),
    )(x_flat, w_qkv, b_qkv)

    # --- attention: one grid step per batch, all heads in-kernel ------------
    row_spec = pl.BlockSpec((S, D_out), lambda b: (b, 0))
    ctx_flat = pl.pallas_call(
        functools.partial(attention_kernel, num_heads=num_heads,
                          head_dim=head_dim, scale=scale),
        out_shape=jax.ShapeDtypeStruct((N, D_out), x.dtype),
        grid=(B,),
        in_specs=[row_spec, row_spec, row_spec],
        out_specs=row_spec,
        compiler_params=pltpu.CompilerParams(
            dimension_semantics=("parallel",)),
    )(q_flat, k_flat, v_flat)

    return ctx_flat.reshape(B, S, D_out)


# ---------------------------------------------------------------------------
# Pure-JAX reference (mirrors the PyTorch forward exactly, f32)
# ---------------------------------------------------------------------------
def reference_forward(x, params, num_heads):
    wq, bq, wk, bk, wv, bv = params
    B, S, _ = x.shape
    D_out = wq.shape[1]
    hd = D_out // num_heads
    q = x @ wq + bq
    k = x @ wk + bk
    v = x @ wv + bv
    heads = lambda t: t.reshape(B, S, num_heads, hd).transpose(0, 2, 1, 3)
    qh, kh, vh = heads(q), heads(k), heads(v)
    scores = jnp.einsum("bhqd,bhkd->bhqk", qh, kh) / math.sqrt(hd)
    probs = jax.nn.softmax(scores, axis=-1)
    ctx = jnp.einsum("bhqk,bhkd->bhqd", probs, vh)
    return ctx.transpose(0, 2, 1, 3).reshape(B, S, D_out)


if __name__ == "__main__":
    # Small deterministic problem: batch=2, seq=8, input=32, output=32, heads=4
    B, S, D_IN, D_OUT, H = 2, 8, 32, 32, 4

    key = jax.random.PRNGKey(0)
    kx, kwq, kbq, kwk, kbk, kwv, kbv = jax.random.split(key, 7)

    x = jax.random.normal(kx, (B, S, D_IN), dtype=jnp.float32)

    # nn.Linear(input_size, output_size): weight (D_OUT, D_IN), bias (D_OUT).
    # Stored transposed (D_IN, D_OUT) for y = x @ W + b.
    bound = 1.0 / math.sqrt(D_IN)
    init_w = lambda k: jax.random.uniform(k, (D_IN, D_OUT), jnp.float32,
                                          -bound, bound)
    init_b = lambda k: jax.random.uniform(k, (1, D_OUT), jnp.float32,
                                          -bound, bound)
    params = (init_w(kwq), init_b(kbq),
              init_w(kwk), init_b(kbk),
              init_w(kwv), init_b(kbv))

    out = self_attention_forward(x, params, H)
    out = jax.block_until_ready(out)

    ref = reference_forward(x, params, H)
    assert out.shape == (B, S, D_OUT)
    # bf16 MXU operands with f32 accumulation -> relaxed tolerance vs f32 ref.
    assert jnp.allclose(out, ref, atol=2e-2, rtol=2e-2), "mismatch vs reference"

    print("KERNEL_OK")
</pallas_src>

<mosaic_0001>
module attributes {stable_mosaic.version = 11 : i64} {
  func.func @qkv_proj_kernel(%arg0: i32, %arg1: memref<16x32xf32, #tpu.memory_space<vmem>>, %arg2: memref<32x96xbf16, #tpu.memory_space<vmem>>, %arg3: memref<1x96xf32, #tpu.memory_space<vmem>>, %arg4: memref<16x32xbf16, #tpu.memory_space<vmem>>, %arg5: memref<16x32xbf16, #tpu.memory_space<vmem>>, %arg6: memref<16x32xbf16, #tpu.memory_space<vmem>>) attributes {dimension_semantics = [#tpu.dimension_semantics<parallel>], iteration_bounds = array<i64: 1>, scalar_prefetch = 0 : i64, scratch_operands = 0 : i64, tpu.core_type = #tpu.core_type<tc>, window_params = [{transform_indices = @transform_0, window_bounds = array<i64: 16, 32>}, {pipeline_mode = #tpu.pipeline_mode<synchronous>, transform_indices = @transform_1, window_bounds = array<i64: 32, 96>}, {pipeline_mode = #tpu.pipeline_mode<synchronous>, transform_indices = @transform_2, window_bounds = array<i64: 1, 96>}, {transform_indices = @transform_3, window_bounds = array<i64: 16, 32>}, {transform_indices = @transform_4, window_bounds = array<i64: 16, 32>}, {transform_indices = @transform_5, window_bounds = array<i64: 16, 32>}]} {
    %c0 = arith.constant 0 : index
    %c0_0 = arith.constant 0 : index
    %0 = vector.load %arg1[%c0, %c0_0] : memref<16x32xf32, #tpu.memory_space<vmem>>, vector<16x32xf32>
    %1 = arith.truncf %0 : vector<16x32xf32> to vector<16x32xbf16>
    %c0_1 = arith.constant 0 : index
    %c0_2 = arith.constant 0 : index
    %2 = vector.load %arg2[%c0_1, %c0_2] : memref<32x96xbf16, #tpu.memory_space<vmem>>, vector<32x96xbf16>
    %cst = arith.constant dense<0.000000e+00> : vector<16x96xf32>
    %3 = tpu.matmul %1, %2, %cst {dimension_numbers = #tpu.dot_dimension_numbers<[1], [0], [0], [1], [0, 0, 1, 1], [], []>} : vector<16x32xbf16>, vector<32x96xbf16>, vector<16x96xf32> -> vector<16x96xf32>
    %c0_3 = arith.constant 0 : index
    %c0_4 = arith.constant 0 : index
    %4 = vector.load %arg3[%c0_3, %c0_4] : memref<1x96xf32, #tpu.memory_space<vmem>>, vector<1x96xf32>
    %5 = vector.broadcast %4 : vector<1x96xf32> to vector<16x96xf32>
    %6 = arith.addf %3, %5 : vector<16x96xf32>
    %7 = vector.extract_strided_slice %6 {offsets = [0, 0], sizes = [16, 32], strides = [1, 1]} : vector<16x96xf32> to vector<16x32xf32>
    %8 = arith.truncf %7 : vector<16x32xf32> to vector<16x32xbf16>
    %c0_5 = arith.constant 0 : index
    %c0_6 = arith.constant 0 : index
    %9 = vector.load %arg4[%c0_5, %c0_6] : memref<16x32xbf16, #tpu.memory_space<vmem>>, vector<16x32xbf16>
    tpu.vector_store %arg4[%c0_5, %c0_6], %8 {strides = array<i32>} : memref<16x32xbf16, #tpu.memory_space<vmem>>, vector<16x32xbf16>,
    %10 = vector.extract_strided_slice %6 {offsets = [0, 32], sizes = [16, 32], strides = [1, 1]} : vector<16x96xf32> to vector<16x32xf32>
    %11 = arith.truncf %10 : vector<16x32xf32> to vector<16x32xbf16>
    %c0_7 = arith.constant 0 : index
    %c0_8 = arith.constant 0 : index
    %12 = vector.load %arg5[%c0_7, %c0_8] : memref<16x32xbf16, #tpu.memory_space<vmem>>, vector<16x32xbf16>
    tpu.vector_store %arg5[%c0_7, %c0_8], %11 {strides = array<i32>} : memref<16x32xbf16, #tpu.memory_space<vmem>>, vector<16x32xbf16>,
    %13 = vector.extract_strided_slice %6 {offsets = [0, 64], sizes = [16, 32], strides = [1, 1]} : vector<16x96xf32> to vector<16x32xf32>
    %14 = arith.truncf %13 : vector<16x32xf32> to vector<16x32xbf16>
    %c0_9 = arith.constant 0 : index
    %c0_10 = arith.constant 0 : index
    %15 = vector.load %arg6[%c0_9, %c0_10] : memref<16x32xbf16, #tpu.memory_space<vmem>>, vector<16x32xbf16>
    tpu.vector_store %arg6[%c0_9, %c0_10], %14 {strides = array<i32>} : memref<16x32xbf16, #tpu.memory_space<vmem>>, vector<16x32xbf16>,
    return
  }
  func.func @transform_0(%arg0: i32) -> (i32, i32) {
    %c0_i32 = arith.constant 0 : i32
    %c0_i32_0 = arith.constant 0 : i32
    return %arg0, %c0_i32 : i32, i32
  }
  func.func @transform_1(%arg0: i32) -> (i32, i32) {
    %c0_i32 = arith.constant 0 : i32
    %c0_i32_0 = arith.constant 0 : i32
    %c0_i32_1 = arith.constant 0 : i32
    return %c0_i32, %c0_i32_0 : i32, i32
  }
  func.func @transform_2(%arg0: i32) -> (i32, i32) {
    %c0_i32 = arith.constant 0 : i32
    %c0_i32_0 = arith.constant 0 : i32
    %c0_i32_1 = arith.constant 0 : i32
    return %c0_i32, %c0_i32_0 : i32, i32
  }
  func.func @transform_3(%arg0: i32) -> (i32, i32) {
    %c0_i32 = arith.constant 0 : i32
    %c0_i32_0 = arith.constant 0 : i32
    return %arg0, %c0_i32 : i32, i32
  }
  func.func @transform_4(%arg0: i32) -> (i32, i32) {
    %c0_i32 = arith.constant 0 : i32
    %c0_i32_0 = arith.constant 0 : i32
    return %arg0, %c0_i32 : i32, i32
  }
  func.func @transform_5(%arg0: i32) -> (i32, i32) {
    %c0_i32 = arith.constant 0 : i32
    %c0_i32_0 = arith.constant 0 : i32
    return %arg0, %c0_i32 : i32, i32
  }
}

</mosaic_0001>

<llo_original>
// kernel: tpu_custom_call.1
$region0: #{tpu_custom_call.1}
  #allocation0 [shape = 'u32[]', space=smem, size = 0x4, offset = 0x4, fixed_abs, tag = 'smem constant byte address 0x4 - core index']
  #allocation1 [shape = 'u32[72,128]{1,0:T(1,128)}', space=vmem, size = 0x9000, scoped, tag = 'internal scratch']
  %s0 = inlined_call_operand.hbm [shape: f32[16,32], index: 0, kind: input, shape index: {}]
  %s1 = inlined_call_operand.hbm [shape: bf16[32,96], index: 1, kind: input, shape index: {}]
  %s2 = inlined_call_operand.vmem [shape: f32[1,96], index: 2, kind: input, shape index: {}]
  %s3 = inlined_call_operand.hbm [shape: bf16[16,32], index: 3, kind: output, shape index: {0}]
  %s4 = inlined_call_operand.hbm [shape: bf16[16,32], index: 4, kind: output, shape index: {1}]
  %s5 = inlined_call_operand.hbm [shape: bf16[16,32], index: 5, kind: output, shape index: {2}]
  %6 = xla_tuple %s3, %s4, %s5
  %s7 = sld [smem:[#allocation0]]
  $region46: #{tpu_custom_call.1} parent=0
    _
  %s9 = ssub.s32 1, %s7
  %s10 = scalar_select 0, %s9, %s7
  $region1: #{tpu_custom_call.1} parent=0
    #allocation2 [shape = 'u8[8192]{0}', space=vmem, size = 0x2000, scoped, tag = 'input window, operand 0, single buffered']
    #allocation3 [shape = 's32[1]{0}', space=sflag, size = 0x4, scoped, tag = 'scoped memory for tpu_custom_call.1']
    #allocation4 [shape = 's32[1]{0}', space=sflag, size = 0x4, scoped, tag = 'scoped memory for tpu_custom_call.1']
    #allocation5 [shape = 'u8[8192]{0}', space=vmem, size = 0x2000, scoped, tag = 'input window, operand 1, single buffered']
    #allocation6 [shape = 's32[1]{0}', space=sflag, size = 0x4, scoped, tag = 'scoped memory for tpu_custom_call.1']
    #allocation7 [shape = 'u8[4096]{0}', space=vmem, size = 0x1000, scoped, tag = 'output window, operand 0, single buffered']
    #allocation8 [shape = 'u8[4096]{0}', space=vmem, size = 0x1000, scoped, tag = 'output window, operand 1, single buffered']
    #allocation9 [shape = 's32[1]{0}', space=sflag, size = 0x4, scoped, tag = 'scoped memory for tpu_custom_call.1']
    #allocation10 [shape = 'u8[4096]{0}', space=vmem, size = 0x1000, scoped, tag = 'output window, operand 2, single buffered']
    %11 = vsyncpa [#allocation3], 0
    %12 = vsyncpa [#allocation6], 0
    %13 = vsyncpa [#allocation4], 0
    %14 = vsyncpa [#allocation9], 0
    // Predicated region
    $region2: #{tpu_custom_call.1} parent=1 // pred_check
      _
    $region3: #{tpu_custom_call.1} parent=1 // pred_check_branch
      %16 = sbr.rel (0) target = $region5
    $region4: #{tpu_custom_call.1} parent=1 // pred_region
      %18 = vsyncadd [#allocation3], 0
      %s19 = sshll.u32 %s0, 4
      %s20 = int_to_ptr.hbm [resolvable:$true] %s19
      %s21 = sshll.u32 [#allocation2], 4
      %s22 = int_to_ptr.vmem [resolvable:$true] %s21
      %27 = dma.hbm_to_vmem [thread:$0]  %s20, 256, %s22, [#allocation3], 128, 128, 8
    $region5: #{tpu_custom_call.1} parent=1 // pred_fallthru
      _
    // Predicated region
    $region6: #{tpu_custom_call.1} parent=1 // pred_check
      _
    $region7: #{tpu_custom_call.1} parent=1 // pred_check_branch
      %29 = sbr.rel (0) target = $region9
    $region8: #{tpu_custom_call.1} parent=1 // pred_region
      %31 = vsyncadd [#allocation6], 0
      %s32 = sshll.u32 %s1, 4
      %s33 = int_to_ptr.hbm [resolvable:$true] %s32
      %s34 = sshll.u32 [#allocation5], 4
      %s35 = int_to_ptr.vmem [resolvable:$true] %s34
      %40 = dma.hbm_to_vmem [thread:$0]  %s33, 256, %s35, [#allocation6], 64, 64, 4
    $region9: #{tpu_custom_call.1} parent=1 // pred_fallthru
      _
    // Predicated region
    $region10: #{tpu_custom_call.1} parent=1 // pred_check
      _
    $region11: #{tpu_custom_call.1} parent=1 // pred_check_branch
      %42 = sbr.rel (0) target = $region13
    $region12: #{tpu_custom_call.1} parent=1 // pred_region
      _
    $region13: #{tpu_custom_call.1} parent=1 // pred_fallthru
      _
    // Predicated region
    $region14: #{tpu_custom_call.1} parent=1 // pred_check
      _
    $region15: #{tpu_custom_call.1} parent=1 // pred_check_branch
      %44 = sbr.rel (0) target = $region17
    $region16: #{tpu_custom_call.1} parent=1 // pred_region
      %46 = dma.done [#allocation3], 256
    $region17: #{tpu_custom_call.1} parent=1 // pred_fallthru
      _
    // Predicated region
    $region18: #{tpu_custom_call.1} parent=1 // pred_check
      _
    $region19: #{tpu_custom_call.1} parent=1 // pred_check_branch
      %48 = sbr.rel (0) target = $region21
    $region20: #{tpu_custom_call.1} parent=1 // pred_region
      %50 = dma.done [#allocation6], 256
    $region21: #{tpu_custom_call.1} parent=1 // pred_fallthru
      _
    %v52 = vld [vmem:[#allocation2] sm:$0xff]
    %v53 = vld [vmem:[#allocation2 + $0x8] sm:$0xff]
    %v54 = vpack.c.bf16 %v53, %v52
    %v55 = vld [vmem:[#allocation5] sm:$0xf]
    %v56 = vld [vmem:[#allocation5 + $0x4] sm:$0xf]
    %v57 = vld [vmem:[#allocation5 + $0x8] sm:$0xf]
    %v58 = vld [vmem:[#allocation5 + $0xc] sm:$0xf]
    %v59 = vld [vmem:[%s2] sm:$0x1]
    %v61 = vperm.slane %v59, 0
    %v67 = vunpack.c.l.b16 %v55
    %v68 = vunpack.c.l.b16 %v56
    %v69 = vunpack.c.l.b16 %v57
    %v70 = vunpack.c.l.b16 %v58
    %v71 = vpack.c.b16 %v68, %v67
    %v72 = vpack.c.b16 %v70, %v69
    %vm75 = vcmask 261120
    %v77 = vsel %vm75, %v54, 0
    %79 = vmatpush.bf16.msra.mxu0 0
    %80 = vmatpush.bf16.msra.mxu0 0
    %81 = vmatpush.bf16.msra.mxu0 0
    %82 = vmatpush.bf16.msra.mxu0 0
    %83 = vmatpush.bf16.msra.mxu0 0
    %84 = vmatpush.bf16.msra.mxu0 0
    %85 = vmatpush.bf16.msra.mxu0 %v72
    %86 = vmatpush.bf16.msra.mxu0 %v71
    %87 = vmatmul.bf16.gmra.mxu0 %v77
    %v88 = vpop.f32.mrf.mxu0
    %v89 = vadd.f32 %v61, %v88
    %v90 = vpop.f32.mrf.mxu0
    %v91 = vadd.f32 %v61, %v90
    %92 = vdwg.mxu0
    %v93 = vpack.c.bf16 %v89, %v89
    %v94 = vpack.c.bf16 %v91, %v91
    %vm95 = vcmask 257024
    %96 = vst.msk [vmem:[#allocation7] sm:$0xf] %vm95, %v93
    %97 = vst.msk [vmem:[#allocation7 + $0x4] sm:$0xf] %vm95, %v94
    %100 = vrot.lane.b32.xlu0 %v93, 96
    %v101 = vpop.permute.xlu0 %100
    %102 = vrot.lane.b32.xlu0 %v94, 96
    %v103 = vpop.permute.xlu0 %102
    %106 = vst.msk [vmem:[#allocation8] sm:$0xf] %vm95, %v101
    %107 = vst.msk [vmem:[#allocation8 + $0x4] sm:$0xf] %vm95, %v103
    %108 = vrot.lane.b32.xlu0 %v93, 64
    %v109 = vpop.permute.xlu0 %108
    %110 = vrot.lane.b32.xlu0 %v94, 64
    %v111 = vpop.permute.xlu0 %110
    %114 = vst.msk [vmem:[#allocation10] sm:$0xf] %vm95, %v109
    %115 = vst.msk [vmem:[#allocation10 + $0x4] sm:$0xf] %vm95, %v111
    // Predicated region
    $region22: #{tpu_custom_call.1} parent=1 // pred_check
      _
    $region23: #{tpu_custom_call.1} parent=1 // pred_check_branch
      %117 = sbr.rel (0) target = $region25
    $region24: #{tpu_custom_call.1} parent=1 // pred_region
      %119 = vsyncadd [#allocation4], 0
      %s120 = sshll.u32 [#allocation7], 4
      %s121 = int_to_ptr.vmem [resolvable:$true] %s120
      %s122 = sshll.u32 %s3, 4
      %s123 = int_to_ptr.hbm [resolvable:$true] %s122
      %128 = dma.vmem_to_hbm [thread:$0]  %s121, 128, %s123, [#allocation4], 64, 64, 4
    $region25: #{tpu_custom_call.1} parent=1 // pred_fallthru
      _
    // Predicated region
    $region26: #{tpu_custom_call.1} parent=1 // pred_check
      _
    $region27: #{tpu_custom_call.1} parent=1 // pred_check_branch
      %130 = sbr.rel (0) target = $region29
    $region28: #{tpu_custom_call.1} parent=1 // pred_region
      %132 = vsyncadd [#allocation9], 0
      %s133 = sshll.u32 [#allocation8], 4
      %s134 = int_to_ptr.vmem [resolvable:$true] %s133
      %s135 = sshll.u32 %s4, 4
      %s136 = int_to_ptr.hbm [resolvable:$true] %s135
      %141 = dma.vmem_to_hbm [thread:$0]  %s134, 128, %s136, [#allocation9], 64, 64, 4
    $region29: #{tpu_custom_call.1} parent=1 // pred_fallthru
      _
    // Predicated region
    $region30: #{tpu_custom_call.1} parent=1 // pred_check
      _
    $region31: #{tpu_custom_call.1} parent=1 // pred_check_branch
      %143 = sbr.rel (0) target = $region33
    $region32: #{tpu_custom_call.1} parent=1 // pred_region
      %145 = vsyncadd [#allocation9], 0
      %s146 = sshll.u32 [#allocation10], 4
      %s147 = int_to_ptr.vmem [resolvable:$true] %s146
      %s148 = sshll.u32 %s5, 4
      %s149 = int_to_ptr.hbm [resolvable:$true] %s148
      %154 = dma.vmem_to_hbm [thread:$0]  %s147, 128, %s149, [#allocation9], 64, 64, 4
    $region33: #{tpu_custom_call.1} parent=1 // pred_fallthru
      _
    // Predicated region
    $region34: #{tpu_custom_call.1} parent=1 // pred_check
      _
    $region35: #{tpu_custom_call.1} parent=1 // pred_check_branch
      %156 = sbr.rel (0) target = $region37
    $region36: #{tpu_custom_call.1} parent=1 // pred_region
      %158 = dma.done [#allocation4], 128
    $region37: #{tpu_custom_call.1} parent=1 // pred_fallthru
      _
    // Predicated region
    $region38: #{tpu_custom_call.1} parent=1 // pred_check
      _
    $region39: #{tpu_custom_call.1} parent=1 // pred_check_branch
      %160 = sbr.rel (0) target = $region41
    $region40: #{tpu_custom_call.1} parent=1 // pred_region
      %162 = dma.done [#allocation9], 128
    $region41: #{tpu_custom_call.1} parent=1 // pred_fallthru
      _
    // Predicated region
    $region42: #{tpu_custom_call.1} parent=1 // pred_check
      _
    $region43: #{tpu_custom_call.1} parent=1 // pred_check_branch
      %164 = sbr.rel (0) target = $region45
    $region44: #{tpu_custom_call.1} parent=1 // pred_region
      %166 = dma.done [#allocation9], 128
    $region45: #{tpu_custom_call.1} parent=1 // pred_fallthru
      _
    %167 = vsyncpa [#allocation3], 1
    %168 = vsyncpa [#allocation6], 1
    %169 = vsyncpa [#allocation4], 1
    %170 = vsyncpa [#allocation9], 1

</llo_original>
